<compile_context>
chip_gen: v5e
topology: v5e:2x2
jax: 0.10.0
libtpu: 0.0.40
codegen_flags: <defaults>
</compile_context>

<pallas_src>
import jax
import jax.numpy as jnp
from jax.experimental import pallas as pl
from jax.experimental.pallas import tpu as pltpu

_LANE = 128     # lane width (last dim)
_SUBLANE = 8    # f32 sublane width (second-to-last dim)


def _round_up(x: int, m: int) -> int:
    return ((x + m - 1) // m) * m


def _cdiv(a: int, b: int) -> int:
    return (a + b - 1) // b


def _pad2d(a: jax.Array, rows: int, cols: int) -> jax.Array:
    r, c = a.shape
    return jnp.pad(a, ((0, rows - r), (0, cols - c)))


# ---------------------------------------------------------------------------
# Kernels.
#   h_ref : VMEM scratch (block_m, Hp) in the matmul operand dtype (bf16) —
#           the activation stays on-chip for the whole MLP.
# ---------------------------------------------------------------------------
def _mlp_kernel_stream(x_ref, w1_ref, b1_ref, ws_ref, bs_ref, wc_ref, bc_ref,
                       o_ref, h_ref):
    """Grid = (M blocks, num_extra trunk layers). One streamed layer / step."""
    l = pl.program_id(1)

    # First trunk layer: ReLU(x @ W1 + b1) -> h  (only at layer-step 0).
    @pl.when(l == 0)
    def _():
        acc = jnp.dot(x_ref[...], w1_ref[...],
                      preferred_element_type=jnp.float32)
        h_ref[...] = jnp.maximum(acc + b1_ref[...], 0.0).astype(h_ref.dtype)

    # Streamed extra trunk layer l: h = ReLU(h @ Ws[l] + bs[l]).
    acc = jnp.dot(h_ref[...], ws_ref[0], preferred_element_type=jnp.float32)
    h_ref[...] = jnp.maximum(acc + bs_ref[0], 0.0).astype(h_ref.dtype)

    # Classifier head (no ReLU), lane-dense padded store — last layer-step.
    @pl.when(l == pl.num_programs(1) - 1)
    def _():
        acc = jnp.dot(h_ref[...], wc_ref[...],
                      preferred_element_type=jnp.float32)
        o_ref[...] = (acc + bc_ref[...]).astype(o_ref.dtype)


def _mlp_kernel_single(x_ref, w1_ref, b1_ref, wc_ref, bc_ref, o_ref, h_ref):
    """num_layers == 1: no streamed trunk stack at all."""
    acc = jnp.dot(x_ref[...], w1_ref[...], preferred_element_type=jnp.float32)
    h_ref[...] = jnp.maximum(acc + b1_ref[...], 0.0).astype(h_ref.dtype)
    acc = jnp.dot(h_ref[...], wc_ref[...], preferred_element_type=jnp.float32)
    o_ref[...] = (acc + bc_ref[...]).astype(o_ref.dtype)


# ---------------------------------------------------------------------------
# One-time parameter preparation (padding / stacking / dtype cast hoisted out
# of the per-call forward path).
# ---------------------------------------------------------------------------
def prepare_params(params, *, use_bf16: bool = True):
    trunk = params["trunk"]
    w1, b1 = trunk[0]
    extra = trunk[1:]
    wc, bc = params["classifier"]

    K0, H = w1.shape
    C = wc.shape[1]
    num_extra = len(extra)

    K0p = _round_up(K0, _LANE)
    Hp = _round_up(H, _LANE)
    Cp = _round_up(C, _LANE)
    wdt = jnp.bfloat16 if use_bf16 else jnp.float32

    prep = {
        "_prepared": True,
        "dims": dict(K0=K0, H=H, C=C, K0p=K0p, Hp=Hp, Cp=Cp,
                     num_extra=num_extra),
        "wdt": wdt,
        "w1": _pad2d(w1, K0p, Hp).astype(wdt),
        "b1": jnp.pad(b1, (0, Hp - H)).reshape(1, Hp).astype(jnp.float32),
        "wc": _pad2d(wc, Hp, Cp).astype(wdt),
        "bc": jnp.pad(bc, (0, Cp - C)).reshape(1, Cp).astype(jnp.float32),
        "ws": None,
        "bs": None,
    }
    if num_extra > 0:
        prep["ws"] = jnp.stack([_pad2d(w, Hp, Hp)
                                for (w, _) in extra]).astype(wdt)
        prep["bs"] = jnp.stack([jnp.pad(b, (0, Hp - H)).reshape(1, Hp)
                                for (_, b) in extra]).astype(jnp.float32)
    return prep


# ---------------------------------------------------------------------------
# Forward: whole MLP in ONE pallas_call.
# ---------------------------------------------------------------------------
def multilayer_classifier_forward(params, x, *, use_bf16: bool = True,
                                  block_m_max: int = 512):
    prep = (params if isinstance(params, dict) and params.get("_prepared")
            else prepare_params(params, use_bf16=use_bf16))

    d = prep["dims"]
    K0, C = d["K0"], d["C"]
    K0p, Hp, Cp = d["K0p"], d["Hp"], d["Cp"]
    num_extra = d["num_extra"]
    wdt = prep["wdt"]
    wsz = jnp.dtype(wdt).itemsize

    M = x.shape[0]
    assert x.shape[1] == K0, f"expected in_dim={K0}, got {x.shape[1]}"

    # Balanced M blocking (avoid a nearly-all-padding trailing block).
    grid_m = max(1, _cdiv(M, block_m_max))
    block_m = _round_up(_cdiv(M, grid_m), _SUBLANE)
    Mp = block_m * grid_m

    # Only the activations are padded/cast per call; weights were prepared.
    x_p = _pad2d(x.astype(jnp.float32), Mp, K0p).astype(wdt)

    # ---- explicit VMEM budget (double-buffered pipeline blocks + scratch) --
    def _tile_bytes(rows, cols, itemsize):
        return (_round_up(max(rows, _SUBLANE), _SUBLANE)
                * _round_up(cols, _LANE) * itemsize)

    vmem = 0
    vmem += 2 * _tile_bytes(block_m, K0p, wsz)      # x block
    vmem += 2 * _tile_bytes(K0p, Hp, wsz)           # W1
    vmem += 2 * _tile_bytes(1, Hp, 4)               # b1
    vmem += 2 * _tile_bytes(Hp, Cp, wsz)            # Wc
    vmem += 2 * _tile_bytes(1, Cp, 4)               # bc
    vmem += 2 * _tile_bytes(block_m, Cp, 4)         # output block
    vmem += _tile_bytes(block_m, Hp, wsz)           # h scratch (single)
    if num_extra > 0:
        vmem += 2 * _tile_bytes(Hp, Hp, wsz)        # streamed trunk W block
        vmem += 2 * _tile_bytes(1, Hp, 4)           # streamed trunk b block
    vmem_limit = int(vmem * 1.3)
    vmem_limit = min(max(vmem_limit, 32 << 20), 100 << 20)

    # Advisory cost estimate for XLA scheduling.
    flops = 2 * Mp * (K0p * Hp + num_extra * Hp * Hp + Hp * Cp)
    bytes_accessed = (x_p.size * wsz
                      + prep["w1"].size * wsz + prep["b1"].size * 4
                      + prep["wc"].size * wsz + prep["bc"].size * 4
                      + Mp * Cp * 4)
    if num_extra > 0:
        bytes_accessed += prep["ws"].size * wsz + prep["bs"].size * 4
    cost = pl.CostEstimate(flops=int(flops), transcendentals=0,
                           bytes_accessed=int(bytes_accessed))

    h_scratch = pltpu.VMEM((block_m, Hp), wdt)

    if num_extra > 0:
        grid = (grid_m, num_extra)
        in_specs = [
            pl.BlockSpec((block_m, K0p), lambda i, l: (i, 0)),      # x
            pl.BlockSpec((K0p, Hp), lambda i, l: (0, 0)),           # W1
            pl.BlockSpec((1, Hp), lambda i, l: (0, 0)),             # b1
            pl.BlockSpec((1, Hp, Hp), lambda i, l: (l, 0, 0)),      # streamed Ws
            pl.BlockSpec((1, 1, Hp), lambda i, l: (l, 0, 0)),       # streamed bs
            pl.BlockSpec((Hp, Cp), lambda i, l: (0, 0)),            # Wc
            pl.BlockSpec((1, Cp), lambda i, l: (0, 0)),             # bc
        ]
        out_spec = pl.BlockSpec((block_m, Cp), lambda i, l: (i, 0))
        operands = (x_p, prep["w1"], prep["b1"], prep["ws"], prep["bs"],
                    prep["wc"], prep["bc"])
        kernel = _mlp_kernel_stream
        dims_sem = ("parallel", "arbitrary")
    else:
        grid = (grid_m,)
        in_specs = [
            pl.BlockSpec((block_m, K0p), lambda i: (i, 0)),         # x
            pl.BlockSpec((K0p, Hp), lambda i: (0, 0)),              # W1
            pl.BlockSpec((1, Hp), lambda i: (0, 0)),                # b1
            pl.BlockSpec((Hp, Cp), lambda i: (0, 0)),               # Wc
            pl.BlockSpec((1, Cp), lambda i: (0, 0)),                # bc
        ]
        out_spec = pl.BlockSpec((block_m, Cp), lambda i: (i, 0))
        operands = (x_p, prep["w1"], prep["b1"], prep["wc"], prep["bc"])
        kernel = _mlp_kernel_single
        dims_sem = ("parallel",)

    out_padded = pl.pallas_call(
        kernel,
        out_shape=jax.ShapeDtypeStruct((Mp, Cp), jnp.float32),
        grid_spec=pltpu.PrefetchScalarGridSpec(
            num_scalar_prefetch=0,
            grid=grid,
            in_specs=in_specs,
            out_specs=out_spec,
            scratch_shapes=[h_scratch],
        ),
        compiler_params=pltpu.CompilerParams(
            dimension_semantics=dims_sem,
            vmem_limit_bytes=vmem_limit,
        ),
        cost_estimate=cost,
    )(*operands)

    return out_padded[:M, :C]


# ---------------------------------------------------------------------------
# Parameter construction (mirrors the PyTorch init: xavier_normal_ weights,
# uniform_[0,1) biases). Weights stored as (fan_in, fan_out).
# ---------------------------------------------------------------------------
def init_params(key, in_dim, h_dim, num_classes, num_layers):
    def xavier_normal(k, fan_in, fan_out):
        std = (2.0 / (fan_in + fan_out)) ** 0.5
        return std * jax.random.normal(k, (fan_in, fan_out), dtype=jnp.float32)

    params = {"trunk": [], "classifier": None}
    dims = [in_dim] + [h_dim] * num_layers
    for layer_idx in range(num_layers):
        key, kw, kb = jax.random.split(key, 3)
        w = xavier_normal(kw, dims[layer_idx], dims[layer_idx + 1])
        b = jax.random.uniform(kb, (dims[layer_idx + 1],), dtype=jnp.float32)
        params["trunk"].append((w, b))
    key, kw, kb = jax.random.split(key, 3)
    wc = xavier_normal(kw, h_dim, num_classes)
    bc = jax.random.uniform(kb, (num_classes,), dtype=jnp.float32)
    params["classifier"] = (wc, bc)
    return params


# ---------------------------------------------------------------------------
# Pure-JAX references.
# ---------------------------------------------------------------------------
def _reference_forward_f32(params, x):
    h = x
    for (w, b) in params["trunk"]:
        h = jnp.maximum(h @ w + b, 0.0)
    wc, bc = params["classifier"]
    return h @ wc + bc


def _reference_forward_kernel_math(params, x, use_bf16):
    """Same math as the kernel: bf16 operands, f32 accumulation, f32 epilogue."""
    wdt = jnp.bfloat16 if use_bf16 else jnp.float32
    h = x.astype(jnp.float32)
    for (w, b) in params["trunk"]:
        acc = jnp.dot(h.astype(wdt), w.astype(wdt),
                      preferred_element_type=jnp.float32)
        h = jnp.maximum(acc + b, 0.0)
    wc, bc = params["classifier"]
    acc = jnp.dot(h.astype(wdt), wc.astype(wdt),
                  preferred_element_type=jnp.float32)
    return acc + bc


if __name__ == "__main__":
    # Small config consistent with the module (BaseModelConfig fields).
    batch = 8
    in_dim = 32
    h_dim = 32
    num_classes = 4
    num_layers = 3

    key = jax.random.PRNGKey(0)
    key, kx = jax.random.split(key)
    x = jax.random.normal(kx, (batch, in_dim), dtype=jnp.float32)

    params = init_params(key, in_dim, h_dim, num_classes, num_layers)
    prep = prepare_params(params, use_bf16=True)   # hoisted out of forward

    logits = multilayer_classifier_forward(prep, x)
    logits = jax.block_until_ready(logits)
    assert logits.shape == (batch, num_classes)

    # Tight check vs a pure-JAX reference using the same bf16-operand /
    # f32-accumulate math as the kernel.
    ref_same = _reference_forward_kernel_math(params, x, use_bf16=True)
    assert jnp.allclose(logits, ref_same, atol=5e-3, rtol=5e-3), \
        "mismatch vs bf16-math reference"

    # Loose check vs the exact f32 PyTorch semantics (only bf16 rounding diff).
    ref_f32 = _reference_forward_f32(params, x)
    assert jnp.allclose(logits, ref_f32, atol=1e-1, rtol=5e-2), \
        "mismatch vs f32 reference"

    # Also exercise the num_layers == 1 path (no streamed trunk stack).
    params1 = init_params(jax.random.PRNGKey(1), in_dim, h_dim, num_classes, 1)
    logits1 = jax.block_until_ready(
        multilayer_classifier_forward(prepare_params(params1), x))
    ref1 = _reference_forward_kernel_math(params1, x, use_bf16=True)
    assert logits1.shape == (batch, num_classes)
    assert jnp.allclose(logits1, ref1, atol=5e-3, rtol=5e-3), \
        "mismatch vs bf16-math reference (num_layers=1)"

    print("KERNEL_OK")
</pallas_src>

<mosaic_0001>
module attributes {stable_mosaic.version = 11 : i64} {
  func.func @_mlp_kernel_stream(%arg0: i32, %arg1: i32, %arg2: memref<8x128xbf16, #tpu.memory_space<vmem>>, %arg3: memref<128x128xbf16, #tpu.memory_space<vmem>>, %arg4: memref<1x128xf32, #tpu.memory_space<vmem>>, %arg5: memref<1x128x128xbf16, #tpu.memory_space<vmem>>, %arg6: memref<1x1x128xf32, #tpu.memory_space<vmem>>, %arg7: memref<128x128xbf16, #tpu.memory_space<vmem>>, %arg8: memref<1x128xf32, #tpu.memory_space<vmem>>, %arg9: memref<8x128xf32, #tpu.memory_space<vmem>>, %arg10: memref<8x128xbf16, #tpu.memory_space<vmem>>) attributes {dimension_semantics = [#tpu.dimension_semantics<parallel>, #tpu.dimension_semantics<arbitrary>], iteration_bounds = array<i64: 1, 2>, scalar_prefetch = 0 : i64, scratch_operands = 1 : i64, tpu.core_type = #tpu.core_type<tc>, window_params = [{transform_indices = @transform_0, window_bounds = array<i64: 8, 128>}, {pipeline_mode = #tpu.pipeline_mode<synchronous>, transform_indices = @transform_1, window_bounds = array<i64: 128, 128>}, {pipeline_mode = #tpu.pipeline_mode<synchronous>, transform_indices = @transform_2, window_bounds = array<i64: 1, 128>}, {transform_indices = @transform_3, window_bounds = array<i64: 1, 128, 128>}, {transform_indices = @transform_4, window_bounds = array<i64: 1, 1, 128>}, {pipeline_mode = #tpu.pipeline_mode<synchronous>, transform_indices = @transform_5, window_bounds = array<i64: 128, 128>}, {pipeline_mode = #tpu.pipeline_mode<synchronous>, transform_indices = @transform_6, window_bounds = array<i64: 1, 128>}, {transform_indices = @transform_7, window_bounds = array<i64: 8, 128>}]} {
    %c0_i32 = arith.constant 0 : i32
    %0 = arith.cmpi eq, %arg1, %c0_i32 : i32
    %1 = arith.extui %0 : i1 to i32
    %c0_i32_0 = arith.constant 0 : i32
    %2 = arith.cmpi ne, %1, %c0_i32_0 : i32
    scf.if %2 {
      %c0_12 = arith.constant 0 : index
      %c0_13 = arith.constant 0 : index
      %18 = vector.load %arg2[%c0_12, %c0_13] : memref<8x128xbf16, #tpu.memory_space<vmem>>, vector<8x128xbf16>
      %c0_14 = arith.constant 0 : index
      %c0_15 = arith.constant 0 : index
      %19 = vector.load %arg3[%c0_14, %c0_15] : memref<128x128xbf16, #tpu.memory_space<vmem>>, vector<128x128xbf16>
      %cst_16 = arith.constant dense<0.000000e+00> : vector<8x128xf32>
      %20 = tpu.matmul %18, %19, %cst_16 {dimension_numbers = #tpu.dot_dimension_numbers<[1], [0], [0], [1], [0, 0, 1, 1], [], []>} : vector<8x128xbf16>, vector<128x128xbf16>, vector<8x128xf32> -> vector<8x128xf32>
      %c0_17 = arith.constant 0 : index
      %c0_18 = arith.constant 0 : index
      %21 = vector.load %arg4[%c0_17, %c0_18] : memref<1x128xf32, #tpu.memory_space<vmem>>, vector<1x128xf32>
      %22 = vector.broadcast %21 : vector<1x128xf32> to vector<8x128xf32>
      %23 = arith.addf %20, %22 : vector<8x128xf32>
      %cst_19 = arith.constant 0.000000e+00 : f32
      %24 = vector.broadcast %cst_19 : f32 to vector<8x128xf32>
      %25 = arith.maximumf %23, %24 : vector<8x128xf32>
      %26 = arith.truncf %25 : vector<8x128xf32> to vector<8x128xbf16>
      %c0_20 = arith.constant 0 : index
      %c0_21 = arith.constant 0 : index
      %27 = vector.load %arg10[%c0_20, %c0_21] : memref<8x128xbf16, #tpu.memory_space<vmem>>, vector<8x128xbf16>
      tpu.vector_store %arg10[%c0_20, %c0_21], %26 {strides = array<i32>} : memref<8x128xbf16, #tpu.memory_space<vmem>>, vector<8x128xbf16>,
    } else {
    }
    %c0 = arith.constant 0 : index
    %c0_1 = arith.constant 0 : index
    %3 = vector.load %arg10[%c0, %c0_1] : memref<8x128xbf16, #tpu.memory_space<vmem>>, vector<8x128xbf16>
    %c0_2 = arith.constant 0 : index
    %c0_3 = arith.constant 0 : index
    %c0_4 = arith.constant 0 : index
    %4 = vector.load %arg5[%c0_2, %c0_3, %c0_4] : memref<1x128x128xbf16, #tpu.memory_space<vmem>>, vector<1x128x128xbf16>
    %5 = vector.shape_cast %4 : vector<1x128x128xbf16> to vector<128x128xbf16>
    %cst = arith.constant dense<0.000000e+00> : vector<8x128xf32>
    %6 = tpu.matmul %3, %5, %cst {dimension_numbers = #tpu.dot_dimension_numbers<[1], [0], [0], [1], [0, 0, 1, 1], [], []>} : vector<8x128xbf16>, vector<128x128xbf16>, vector<8x128xf32> -> vector<8x128xf32>
    %c0_5 = arith.constant 0 : index
    %c0_6 = arith.constant 0 : index
    %c0_7 = arith.constant 0 : index
    %7 = vector.load %arg6[%c0_5, %c0_6, %c0_7] : memref<1x1x128xf32, #tpu.memory_space<vmem>>, vector<1x1x128xf32>
    %8 = vector.shape_cast %7 : vector<1x1x128xf32> to vector<1x128xf32>
    %9 = vector.broadcast %8 : vector<1x128xf32> to vector<8x128xf32>
    %10 = arith.addf %6, %9 : vector<8x128xf32>
    %cst_8 = arith.constant 0.000000e+00 : f32
    %11 = vector.broadcast %cst_8 : f32 to vector<8x128xf32>
    %12 = arith.maximumf %10, %11 : vector<8x128xf32>
    %13 = arith.truncf %12 : vector<8x128xf32> to vector<8x128xbf16>
    %c0_9 = arith.constant 0 : index
    %c0_10 = arith.constant 0 : index
    %14 = vector.load %arg10[%c0_9, %c0_10] : memref<8x128xbf16, #tpu.memory_space<vmem>>, vector<8x128xbf16>
    tpu.vector_store %arg10[%c0_9, %c0_10], %13 {strides = array<i32>} : memref<8x128xbf16, #tpu.memory_space<vmem>>, vector<8x128xbf16>,
    %c1_i32 = arith.constant 1 : i32
    %15 = arith.cmpi eq, %arg1, %c1_i32 : i32
    %16 = arith.extui %15 : i1 to i32
    %c0_i32_11 = arith.constant 0 : i32
    %17 = arith.cmpi ne, %16, %c0_i32_11 : i32
    scf.if %17 {
      %c0_12 = arith.constant 0 : index
      %c0_13 = arith.constant 0 : index
      %18 = vector.load %arg10[%c0_12, %c0_13] : memref<8x128xbf16, #tpu.memory_space<vmem>>, vector<8x128xbf16>
      %c0_14 = arith.constant 0 : index
      %c0_15 = arith.constant 0 : index
      %19 = vector.load %arg7[%c0_14, %c0_15] : memref<128x128xbf16, #tpu.memory_space<vmem>>, vector<128x128xbf16>
      %cst_16 = arith.constant dense<0.000000e+00> : vector<8x128xf32>
      %20 = tpu.matmul %18, %19, %cst_16 {dimension_numbers = #tpu.dot_dimension_numbers<[1], [0], [0], [1], [0, 0, 1, 1], [], []>} : vector<8x128xbf16>, vector<128x128xbf16>, vector<8x128xf32> -> vector<8x128xf32>
      %c0_17 = arith.constant 0 : index
      %c0_18 = arith.constant 0 : index
      %21 = vector.load %arg8[%c0_17, %c0_18] : memref<1x128xf32, #tpu.memory_space<vmem>>, vector<1x128xf32>
      %22 = vector.broadcast %21 : vector<1x128xf32> to vector<8x128xf32>
      %23 = arith.addf %20, %22 : vector<8x128xf32>
      %c0_19 = arith.constant 0 : index
      %c0_20 = arith.constant 0 : index
      %24 = vector.load %arg9[%c0_19, %c0_20] : memref<8x128xf32, #tpu.memory_space<vmem>>, vector<8x128xf32>
      tpu.vector_store %arg9[%c0_19, %c0_20], %23 {strides = array<i32>} : memref<8x128xf32, #tpu.memory_space<vmem>>, vector<8x128xf32>,
    } else {
    }
    return
  }
  func.func @transform_0(%arg0: i32, %arg1: i32) -> (i32, i32) {
    %c0_i32 = arith.constant 0 : i32
    %c0_i32_0 = arith.constant 0 : i32
    return %arg0, %c0_i32 : i32, i32
  }
  func.func @transform_1(%arg0: i32, %arg1: i32) -> (i32, i32) {
    %c0_i32 = arith.constant 0 : i32
    %c0_i32_0 = arith.constant 0 : i32
    %c0_i32_1 = arith.constant 0 : i32
    return %c0_i32, %c0_i32_0 : i32, i32
  }
  func.func @transform_2(%arg0: i32, %arg1: i32) -> (i32, i32) {
    %c0_i32 = arith.constant 0 : i32
    %c0_i32_0 = arith.constant 0 : i32
    %c0_i32_1 = arith.constant 0 : i32
    return %c0_i32, %c0_i32_0 : i32, i32
  }
  func.func @transform_3(%arg0: i32, %arg1: i32) -> (i32, i32, i32) {
    %c0_i32 = arith.constant 0 : i32
    %c0_i32_0 = arith.constant 0 : i32
    %c0_i32_1 = arith.constant 0 : i32
    return %arg1, %c0_i32, %c0_i32_0 : i32, i32, i32
  }
  func.func @transform_4(%arg0: i32, %arg1: i32) -> (i32, i32, i32) {
    %c0_i32 = arith.constant 0 : i32
    %c0_i32_0 = arith.constant 0 : i32
    %c0_i32_1 = arith.constant 0 : i32
    return %arg1, %c0_i32, %c0_i32_0 : i32, i32, i32
  }
  func.func @transform_5(%arg0: i32, %arg1: i32) -> (i32, i32) {
    %c0_i32 = arith.constant 0 : i32
    %c0_i32_0 = arith.constant 0 : i32
    %c0_i32_1 = arith.constant 0 : i32
    return %c0_i32, %c0_i32_0 : i32, i32
  }
  func.func @transform_6(%arg0: i32, %arg1: i32) -> (i32, i32) {
    %c0_i32 = arith.constant 0 : i32
    %c0_i32_0 = arith.constant 0 : i32
    %c0_i32_1 = arith.constant 0 : i32
    return %c0_i32, %c0_i32_0 : i32, i32
  }
  func.func @transform_7(%arg0: i32, %arg1: i32) -> (i32, i32) {
    %c0_i32 = arith.constant 0 : i32
    %c0_i32_0 = arith.constant 0 : i32
    return %arg0, %c0_i32 : i32, i32
  }
}

</mosaic_0001>

<llo_original>
// kernel: tpu_custom_call.1
$region0: #{tpu_custom_call.1}
  #allocation0 [shape = 'u32[]', space=smem, size = 0x4, offset = 0x4, fixed_abs, tag = 'smem constant byte address 0x4 - core index']
  #allocation1 [shape = 'u32[72,128]{1,0:T(1,128)}', space=vmem, size = 0x9000, scoped, tag = 'internal scratch']
  #allocation2 [shape = 'bf16[8,128]{1,0:T(8,128)(2,1)}', space=vmem, size = 0x800, scoped, tag = 'scratch operand']
  %s0 = inlined_call_operand.hbm [shape: bf16[8,128], index: 0, kind: input, shape index: {}]
  %s1 = inlined_call_operand.hbm [shape: bf16[128,128], index: 1, kind: input, shape index: {}]
  %s2 = inlined_call_operand.vmem [shape: f32[1,128], index: 2, kind: input, shape index: {}]
  %s3 = inlined_call_operand.hbm [shape: bf16[2,128,128], index: 3, kind: input, shape index: {}]
  %s4 = inlined_call_operand.vmem [shape: f32[2,1,128], index: 4, kind: input, shape index: {}]
  %s5 = inlined_call_operand.hbm [shape: bf16[128,128], index: 5, kind: input, shape index: {}]
  %s6 = inlined_call_operand.vmem [shape: f32[1,128], index: 6, kind: input, shape index: {}]
  %s7 = inlined_call_operand.hbm [shape: f32[8,128], index: 7, kind: output, shape index: {}]
  %s8 = sld [smem:[#allocation0]]
  $region85: #{tpu_custom_call.1} parent=0
    _
  %s10 = ssub.s32 1, %s8
  %s11 = scalar_select 0, %s10, %s8
  $region1: #{tpu_custom_call.1} parent=0
    #allocation3 [shape = 'u8[2048]{0}', space=vmem, size = 0x800, scoped, tag = 'input window, operand 0, single buffered']
    #allocation4 [shape = 's32[2]{0}', space=sflag, size = 0x8, scoped, tag = 'scoped memory for tpu_custom_call.1']
    #allocation5 [shape = 's32[2]{0}', space=sflag, size = 0x8, scoped, tag = 'scoped memory for tpu_custom_call.1']
    #allocation6 [shape = 'u8[32768]{0}', space=vmem, size = 0x8000, scoped, tag = 'input window, operand 1, single buffered']
    #allocation7 [shape = 's32[1]{0}', space=sflag, size = 0x4, scoped, tag = 'scoped memory for tpu_custom_call.1']
    #allocation8 [shape = 'u8[65536]{0}', space=vmem, size = 0x10000, scoped, tag = 'input window, operand 3']
    #allocation9 [shape = 'u8[32768]{0}', space=vmem, size = 0x8000, scoped, tag = 'input window, operand 5, single buffered']
    #allocation10 [shape = 'u8[4096]{0}', space=vmem, size = 0x1000, scoped, tag = 'output window, operand 0, single buffered']
    %12 = vsyncpa [#allocation4], 0
    %13 = vsyncpa [#allocation7], 0
    %14 = vsyncpa [#allocation5], 0
    loop: start=0, step=1, limit=4
    $region2: #{tpu_custom_call.1} parent=1 // loop_pre_header
      _
    $region3: #{tpu_custom_call.1} parent=1 // loop_header
      %s16 = sphi 0, %s20
      %p17 = scmp.ge.s32.totalorder %s16, 4
      %s23 = sphi 0, %s35
      %s24 = sphi 0, %s31
      %s25 = sphi 0, %s23
      %s26 = sphi 0, %s24
      %s27 = sphi 0, %s25
      %s28 = sphi 0, %s26
      %s38 = sphi 0, %s40
      %s41 = sphi 0, %s38
      %s42 = sphi 0, %s41
      %s58 = sphi 0, %s42
      %s62 = sphi 0, %s62
      %s64 = sphi 0, %s62
      %s65 = sphi 0, %s64
      %s79 = sphi 0, %s65
      %s83 = sphi 0, %s83
      %s85 = sphi 0, %s83
      %s86 = sphi 0, %s85
      %s100 = sphi 0, %s86
      %s106 = sphi 0, %s108
      %s109 = sphi 0, %s106
      %s110 = sphi 0, %s109
      %s126 = sphi 0, %s110
      %s132 = sphi 0, %s134
      %s135 = sphi 0, %s132
      %s136 = sphi 0, %s135
      %s152 = sphi 0, %s136
      %s156 = sphi 0, %s156
      %s158 = sphi 0, %s156
      %s159 = sphi 0, %s158
      %s173 = sphi 0, %s159
      %s177 = sphi 0, %s177
      %s179 = sphi 0, %s177
      %s180 = sphi 0, %s179
      %s194 = sphi 0, %s180
      %s200 = sphi 0, %s202
      %s203 = sphi 0, %s200
      %s204 = sphi 0, %s203
      %s220 = sphi 0, %s204
    $region4: #{tpu_custom_call.1} parent=1 // loop_header_branch
      %19 = sbr.rel (%p17) target = $region8
    $region5: #{tpu_custom_call.1} parent=1 // loop_body
      %s21 = ssub.s32 %s16, 1
      %s22 = ssub.s32 %s16, 2
      %s29 = sadd.s32 1, %s24
      %p30 = scmp.ge.s32.totalorder %s29, 2
      %s31 = scalar_select %p30, 0, %s29
      %s32 = sadd.s32 1, %s23
      %s33 = scalar_select %p30, %s32, %s23
      %p34 = scmp.ge.s32.totalorder %s33, 1
      %s35 = scalar_select %p34, 0, %s33
      %s36 = ssub.s32 %s23, %s35
      %p37 = scmp.eq.s32.totalorder %s36, 0
      %s39 = sadd.s32 %s38, 1
      %s40 = scalar_select %p37, %s38, %s39
      %p43 = pneg %p37
      %p44 = scmp.eq.s32.totalorder %s16, 1
      %p45 = por %p43, %p44
      %p46 = scmp.ne.s32.totalorder %s38, %s41
      %p47 = scmp.eq.s32.totalorder %s16, 0
      %p48 = por %p46, %p47
      %p49 = scmp.ne.s32.totalorder %s38, %s41
      %p50 = scmp.eq.s32.totalorder %s21, 1
      %p51 = por %p49, %p50
      %p52 = scmp.ne.s32.totalorder %s41, %s42
      %p53 = scmp.eq.s32.totalorder %s21, 0
      %p54 = por %p52, %p53
      %p55 = scmp.ne.s32.totalorder %s41, %s42
      %p56 = scmp.eq.s32.totalorder %s22, 1
      %p57 = por %p55, %p56
      %p59 = scmp.ne.s32.totalorder %s42, %s58
      %p60 = scmp.eq.s32.totalorder %s22, 0
      %p61 = por %p59, %p60
      %s63 = sadd.s32 %s62, 1
      %p66 = scmp.eq.s32.totalorder %s16, 1
      %p67 = scmp.ne.s32.totalorder %s62, %s64
      %p68 = scmp.eq.s32.totalorder %s16, 0
      %p69 = por %p67, %p68
      %p70 = scmp.ne.s32.totalorder %s62, %s64
      %p71 = scmp.eq.s32.totalorder %s21, 1
      %p72 = por %p70, %p71
      %p73 = scmp.ne.s32.totalorder %s64, %s65
      %p74 = scmp.eq.s32.totalorder %s21, 0
      %p75 = por %p73, %p74
      %p76 = scmp.ne.s32.totalorder %s64, %s65
      %p77 = scmp.eq.s32.totalorder %s22, 1
      %p78 = por %p76, %p77
      %p80 = scmp.ne.s32.totalorder %s65, %s79
      %p81 = scmp.eq.s32.totalorder %s22, 0
      %p82 = por %p80, %p81
      %s84 = sadd.s32 %s83, 1
      %p87 = scmp.eq.s32.totalorder %s16, 1
      %p88 = scmp.ne.s32.totalorder %s83, %s85
      %p89 = scmp.eq.s32.totalorder %s16, 0
      %p90 = por %p88, %p89
      %p91 = scmp.ne.s32.totalorder %s83, %s85
      %p92 = scmp.eq.s32.totalorder %s21, 1
      %p93 = por %p91, %p92
      %p94 = scmp.ne.s32.totalorder %s85, %s86
      %p95 = scmp.eq.s32.totalorder %s21, 0
      %p96 = por %p94, %p95
      %p97 = scmp.ne.s32.totalorder %s85, %s86
      %p98 = scmp.eq.s32.totalorder %s22, 1
      %p99 = por %p97, %p98
      %p101 = scmp.ne.s32.totalorder %s86, %s100
      %p102 = scmp.eq.s32.totalorder %s22, 0
      %p103 = por %p101, %p102
      %s104 = ssub.s32 %s24, %s31
      %p105 = scmp.eq.s32.totalorder %s104, 0
      %s107 = sadd.s32 %s106, 1
      %s108 = scalar_select %p105, %s106, %s107
      %p111 = pneg %p105
      %p112 = scmp.eq.s32.totalorder %s16, 1
      %p113 = por %p111, %p112
      %p114 = scmp.ne.s32.totalorder %s106, %s109
      %p115 = scmp.eq.s32.totalorder %s16, 0
      %p116 = por %p114, %p115
      %p117 = scmp.ne.s32.totalorder %s106, %s109
      %p118 = scmp.eq.s32.totalorder %s21, 1
      %p119 = por %p117, %p118
      %p120 = scmp.ne.s32.totalorder %s109, %s110
      %p121 = scmp.eq.s32.totalorder %s21, 0
      %p122 = por %p120, %p121
      %p123 = scmp.ne.s32.totalorder %s109, %s110
      %p124 = scmp.eq.s32.totalorder %s22, 1
      %p125 = por %p123, %p124
      %p127 = scmp.ne.s32.totalorder %s110, %s126
      %p128 = scmp.eq.s32.totalorder %s22, 0
      %p129 = por %p127, %p128
      %s130 = ssub.s32 %s24, %s31
      %p131 = scmp.eq.s32.totalorder %s130, 0
      %s133 = sadd.s32 %s132, 1
      %s134 = scalar_select %p131, %s132, %s133
      %p137 = pneg %p131
      %p138 = scmp.eq.s32.totalorder %s16, 1
      %p139 = por %p137, %p138
      %p140 = scmp.ne.s32.totalorder %s132, %s135
      %p141 = scmp.eq.s32.totalorder %s16, 0
      %p142 = por %p140, %p141
      %p143 = scmp.ne.s32.totalorder %s132, %s135
      %p144 = scmp.eq.s32.totalorder %s21, 1
      %p145 = por %p143, %p144
      %p146 = scmp.ne.s32.totalorder %s135, %s136
      %p147 = scmp.eq.s32.totalorder %s21, 0
      %p148 = por %p146, %p147
      %p149 = scmp.ne.s32.totalorder %s135, %s136
      %p150 = scmp.eq.s32.totalorder %s22, 1
      %p151 = por %p149, %p150
      %p153 = scmp.ne.s32.totalorder %s136, %s152
      %p154 = scmp.eq.s32.totalorder %s22, 0
      %p155 = por %p153, %p154
      %s157 = sadd.s32 %s156, 1
      %p160 = scmp.eq.s32.totalorder %s16, 1
      %p161 = scmp.ne.s32.totalorder %s156, %s158
      %p162 = scmp.eq.s32.totalorder %s16, 0
      %p163 = por %p161, %p162
      %p164 = scmp.ne.s32.totalorder %s156, %s158
      %p165 = scmp.eq.s32.totalorder %s21, 1
      %p166 = por %p164, %p165
      %p167 = scmp.ne.s32.totalorder %s158, %s159
      %p168 = scmp.eq.s32.totalorder %s21, 0
      %p169 = por %p167, %p168
      %p170 = scmp.ne.s32.totalorder %s158, %s159
      %p171 = scmp.eq.s32.totalorder %s22, 1
      %p172 = por %p170, %p171
      %p174 = scmp.ne.s32.totalorder %s159, %s173
      %p175 = scmp.eq.s32.totalorder %s22, 0
      %p176 = por %p174, %p175
      %s178 = sadd.s32 %s177, 1
      %p181 = scmp.eq.s32.totalorder %s16, 1
      %p182 = scmp.ne.s32.totalorder %s177, %s179
      %p183 = scmp.eq.s32.totalorder %s16, 0
      %p184 = por %p182, %p183
      %p185 = scmp.ne.s32.totalorder %s177, %s179
      %p186 = scmp.eq.s32.totalorder %s21, 1
      %p187 = por %p185, %p186
      %p188 = scmp.ne.s32.totalorder %s179, %s180
      %p189 = scmp.eq.s32.totalorder %s21, 0
      %p190 = por %p188, %p189
      %p191 = scmp.ne.s32.totalorder %s179, %s180
      %p192 = scmp.eq.s32.totalorder %s22, 1
      %p193 = por %p191, %p192
      %p195 = scmp.ne.s32.totalorder %s180, %s194
      %p196 = scmp.eq.s32.totalorder %s22, 0
      %p197 = por %p195, %p196
      %s198 = ssub.s32 %s23, %s35
      %p199 = scmp.eq.s32.totalorder %s198, 0
      %s201 = sadd.s32 %s200, 1
      %s202 = scalar_select %p199, %s200, %s201
      %p205 = pneg %p199
      %p206 = scmp.eq.s32.totalorder %s16, 1
      %p207 = por %p205, %p206
      %p208 = scmp.ne.s32.totalorder %s200, %s203
      %p209 = scmp.eq.s32.totalorder %s16, 0
      %p210 = por %p208, %p209
      %p211 = scmp.ne.s32.totalorder %s200, %s203
      %p212 = scmp.eq.s32.totalorder %s21, 1
      %p213 = por %p211, %p212
      %p214 = scmp.ne.s32.totalorder %s203, %s204
      %p215 = scmp.eq.s32.totalorder %s21, 0
      %p216 = por %p214, %p215
      %p217 = scmp.ne.s32.totalorder %s203, %s204
      %p218 = scmp.eq.s32.totalorder %s22, 1
      %p219 = por %p217, %p218
      %p221 = scmp.ne.s32.totalorder %s204, %s220
      %p222 = scmp.eq.s32.totalorder %s22, 0
      %p223 = por %p221, %p222
      %p224 = scmp.le.s32.totalorder 1, %s16
      %p225 = scmp.lt.s32.totalorder %s16, 3
      %p226 = pnand %p224, %p225
      %p227 = pneg %p226
      // Predicated region
      $region9: #{tpu_custom_call.1} parent=5 // pred_check
        _
      $region10: #{tpu_custom_call.1} parent=5 // pred_check_branch
        %229 = sbr.rel (%p226) target = $region12
      $region11: #{tpu_custom_call.1} parent=5 // pred_region
        %s230 = ssub.s32 %s16, 1
        // Predicated region
        $region13: #{tpu_custom_call.1} parent=11 // pred_check
          %p231 = pneg %p54
        $region14: #{tpu_custom_call.1} parent=11 // pred_check_branch
          %233 = sbr.rel (%p231) target = $region16
        $region15: #{tpu_custom_call.1} parent=11 // pred_region
          %235 = vsyncadd [#allocation4], 0
          %s236 = smul.addr %s25, 4
          %s237 = scalar_lea.hbm %s0, %s236
          %s239 = sshll.u32 %s237, 4
          %s240 = int_to_ptr.hbm [resolvable:$true] %s239
          %s241 = sshll.u32 [#allocation3], 4
          %s242 = int_to_ptr.vmem [resolvable:$true] %s241
          %244 = dma.hbm_to_vmem [thread:$0]  %s240, 64, %s242, [#allocation4]
        $region16: #{tpu_custom_call.1} parent=11 // pred_fallthru
          _
        // Predicated region
        $region17: #{tpu_custom_call.1} parent=11 // pred_check
          %p245 = pneg %p75
        $region18: #{tpu_custom_call.1} parent=11 // pred_check_branch
          %247 = sbr.rel (%p245) target = $region20
        $region19: #{tpu_custom_call.1} parent=11 // pred_region
          %249 = vsyncadd [#allocation7], 0
          %s250 = sshll.u32 %s1, 4
          %s251 = int_to_ptr.hbm [resolvable:$true] %s250
          %s252 = sshll.u32 [#allocation6], 4
          %s253 = int_to_ptr.vmem [resolvable:$true] %s252
          %258 = dma.hbm_to_vmem [thread:$0]  %s251, 1024, %s253, [#allocation7], 64, 64, 4
        $region20: #{tpu_custom_call.1} parent=11 // pred_fallthru
          _
        // Predicated region
        $region21: #{tpu_custom_call.1} parent=11 // pred_check
          %p259 = pneg %p96
        $region22: #{tpu_custom_call.1} parent=11 // pred_check_branch
          %261 = sbr.rel (%p259) target = $region24
        $region23: #{tpu_custom_call.1} parent=11 // pred_region
          _
        $region24: #{tpu_custom_call.1} parent=11 // pred_fallthru
          _
        // Predicated region
        $region25: #{tpu_custom_call.1} parent=11 // pred_check
          %p262 = pneg %p169
        $region26: #{tpu_custom_call.1} parent=11 // pred_check_branch
          %264 = sbr.rel (%p262) target = $region28
        $region27: #{tpu_custom_call.1} parent=11 // pred_region
          %266 = vsyncadd [#allocation7], 0
          %s267 = sshll.u32 %s5, 4
          %s268 = int_to_ptr.hbm [resolvable:$true] %s267
          %s269 = sshll.u32 [#allocation9], 4
          %s270 = int_to_ptr.vmem [resolvable:$true] %s269
          %275 = dma.hbm_to_vmem [thread:$0]  %s268, 1024, %s270, [#allocation7], 64, 64, 4
        $region28: #{tpu_custom_call.1} parent=11 // pred_fallthru
          _
        // Predicated region
        $region29: #{tpu_custom_call.1} parent=11 // pred_check
          %p276 = pneg %p190
        $region30: #{tpu_custom_call.1} parent=11 // pred_check_branch
          %278 = sbr.rel (%p276) target = $region32
        $region31: #{tpu_custom_call.1} parent=11 // pred_region
          _
        $region32: #{tpu_custom_call.1} parent=11 // pred_fallthru
          _
      $region12: #{tpu_custom_call.1} parent=5 // pred_fallthru
        _
      %p279 = scmp.lt.s32.totalorder %s16, 2
      // Predicated region
      $region33: #{tpu_custom_call.1} parent=5 // pred_check
        %p280 = pneg %p279
      $region34: #{tpu_custom_call.1} parent=5 // pred_check_branch
        %282 = sbr.rel (%p280) target = $region36
      $region35: #{tpu_custom_call.1} parent=5 // pred_region
        // Predicated region
        $region37: #{tpu_custom_call.1} parent=35 // pred_check
          %p283 = pneg %p116
        $region38: #{tpu_custom_call.1} parent=35 // pred_check_branch
          %285 = sbr.rel (%p283) target = $region40
        $region39: #{tpu_custom_call.1} parent=35 // pred_region
          %s286 = sand.u32 %s16, 1
          %s287 = scalar_lea.sflag [#allocation4], %s286
          %s288 = sand.u32 %s106, 1
          %s289 = smul.addr %s288, 64
          %s290 = scalar_lea.vmem [#allocation8], %s289
          %292 = vsyncadd %s287, 0
          %s293 = smul.addr %s24, 16
          %s294 = smul.addr %s293, 4
          %s295 = scalar_lea.hbm %s3, %s294
          %s296 = sshll.u32 %s295, 4
          %s297 = int_to_ptr.hbm [resolvable:$true] %s296
          %s298 = sshll.u32 %s290, 4
          %s299 = int_to_ptr.vmem [resolvable:$true] %s298
          %304 = dma.hbm_to_vmem [thread:$0]  %s297, 1024, %s299, %s287, 64, 64, 4
        $region40: #{tpu_custom_call.1} parent=35 // pred_fallthru
          _
        // Predicated region
        $region41: #{tpu_custom_call.1} parent=35 // pred_check
          %p305 = pneg %p142
        $region42: #{tpu_custom_call.1} parent=35 // pred_check_branch
          %307 = sbr.rel (%p305) target = $region44
        $region43: #{tpu_custom_call.1} parent=35 // pred_region
          %p308 = scmp.lt.s32.totalorder %s24, 1
          %s309 = scalar_select %p308, %s24, 1
          %s310 = scalar_lea.vmem %s4, %s309
        $region44: #{tpu_custom_call.1} parent=35 // pred_fallthru
          _
      $region36: #{tpu_custom_call.1} parent=5 // pred_fallthru
        _
      %p311 = scmp.le.s32.totalorder 1, %s16
      %p312 = scmp.lt.s32.totalorder %s16, 3
      %p313 = pnand %p311, %p312
      %p314 = pneg %p313
      // Predicated region
      $region45: #{tpu_custom_call.1} parent=5 // pred_check
        _
      $region46: #{tpu_custom_call.1} parent=5 // pred_check_branch
        %316 = sbr.rel (%p313) target = $region48
      $region47: #{tpu_custom_call.1} parent=5 // pred_region
        %s317 = ssub.s32 %s16, 1
        // Predicated region
        $region49: #{tpu_custom_call.1} parent=47 // pred_check
          %p318 = pneg %p54
        $region50: #{tpu_custom_call.1} parent=47 // pred_check_branch
          %320 = sbr.rel (%p318) target = $region52
        $region51: #{tpu_custom_call.1} parent=47 // pred_region
          %322 = dma.done [#allocation4], 64
        $region52: #{tpu_custom_call.1} parent=47 // pred_fallthru
          _
        // Predicated region
        $region53: #{tpu_custom_call.1} parent=47 // pred_check
          %p323 = pneg %p75
        $region54: #{tpu_custom_call.1} parent=47 // pred_check_branch
          %325 = sbr.rel (%p323) target = $region56
        $region55: #{tpu_custom_call.1} parent=47 // pred_region
          %327 = dma.done [#allocation7], 1024
        $region56: #{tpu_custom_call.1} parent=47 // pred_fallthru
          _
        %s328 = sand.u32 %s21, 1
        %s329 = scalar_lea.sflag [#allocation4], %s328
        %s330 = sand.u32 %s109, 1
        %s331 = smul.addr %s330, 64
        %s332 = scalar_lea.vmem [#allocation8], %s331
        // Predicated region
        $region57: #{tpu_custom_call.1} parent=47 // pred_check
          %p333 = pneg %p122
        $region58: #{tpu_custom_call.1} parent=47 // pred_check_branch
          %335 = sbr.rel (%p333) target = $region60
        $region59: #{tpu_custom_call.1} parent=47 // pred_region
          %337 = dma.done %s329, 1024
        $region60: #{tpu_custom_call.1} parent=47 // pred_fallthru
          _
        // Predicated region
        $region61: #{tpu_custom_call.1} parent=47 // pred_check
          %p338 = pneg %p169
        $region62: #{tpu_custom_call.1} parent=47 // pred_check_branch
          %340 = sbr.rel (%p338) target = $region64
        $region63: #{tpu_custom_call.1} parent=47 // pred_region
          %342 = dma.done [#allocation7], 1024
        $region64: #{tpu_custom_call.1} parent=47 // pred_fallthru
          _
        %p343 = pneg %p54
        %p344 = pneg %p51
        %p345 = pneg %p75
        %p346 = pneg %p72
        %p347 = pneg %p96
        %p348 = pneg %p93
        %s349 = sand.u32 %s21, 1
        %s350 = scalar_lea.sflag [#allocation4], %s349
        %s351 = sand.u32 %s109, 1
        %s352 = smul.addr %s351, 64
        %s353 = scalar_lea.vmem [#allocation8], %s352
        %p354 = pneg %p122
        %p355 = pneg %p119
        %p356 = scmp.lt.s32.totalorder %s26, 1
        %s357 = scalar_select %p356, %s26, 1
        %s358 = scalar_lea.vmem %s4, %s357
        %p359 = pneg %p148
        %p360 = pneg %p145
        %p361 = pneg %p169
        %p362 = pneg %p166
        %p363 = pneg %p190
        %p364 = pneg %p187
        %p365 = pneg %p216
        %p366 = pneg %p213
        %p367 = scmp.lt.s32.totalorder %s26, 1
        %s368 = scalar_select %p367, %s26, 1
        %s369 = scalar_lea.vmem %s4, %s368
        %p370 = scmp.eq.s32.totalorder %s26, 0
        // Predicated region
        $region65: #{tpu_custom_call.1} parent=47 // pred_check
          %p371 = pneg %p370
        $region66: #{tpu_custom_call.1} parent=47 // pred_check_branch
          %373 = sbr.rel (%p371) target = $region68
        $region67: #{tpu_custom_call.1} parent=47 // pred_region
          %v374 = vld [vmem:[#allocation3] sm:$0xf]
          %v375 = vld [vmem:[#allocation6] sm:$0xf]
          %v376 = vld [vmem:[#allocation6 + $0x4] sm:$0xf]
          %v377 = vld [vmem:[#allocation6 + $0x8] sm:$0xf]
          %v378 = vld [vmem:[#allocation6 + $0xc] sm:$0xf]
          %v379 = vld [vmem:[#allocation6 + $0x10] sm:$0xf]
          %v380 = vld [vmem:[#allocation6 + $0x14] sm:$0xf]
          %v381 = vld [vmem:[#allocation6 + $0x18] sm:$0xf]
          %v382 = vld [vmem:[#allocation6 + $0x1c] sm:$0xf]
          %v383 = vld [vmem:[#allocation6 + $0x20] sm:$0xf]
          %v384 = vld [vmem:[#allocation6 + $0x24] sm:$0xf]
          %v385 = vld [vmem:[#allocation6 + $0x28] sm:$0xf]
          %v386 = vld [vmem:[#allocation6 + $0x2c] sm:$0xf]
          %v387 = vld [vmem:[#allocation6 + $0x30] sm:$0xf]
          %v388 = vld [vmem:[#allocation6 + $0x34] sm:$0xf]
          %v389 = vld [vmem:[#allocation6 + $0x38] sm:$0xf]
          %v390 = vld [vmem:[#allocation6 + $0x3c] sm:$0xf]
          %v391 = vld [vmem:[%s2] sm:$0x1]
          %v393 = vperm.slane %v391, 0
          %v411 = vunpack.c.l.b16 %v375
          %v412 = vunpack.c.l.b16 %v376
          %v413 = vunpack.c.l.b16 %v377
          %v414 = vunpack.c.l.b16 %v378
          %v415 = vunpack.c.l.b16 %v379
          %v416 = vunpack.c.l.b16 %v380
          %v417 = vunpack.c.l.b16 %v381
          %v418 = vunpack.c.l.b16 %v382
          %v419 = vunpack.c.l.b16 %v383
          %v420 = vunpack.c.l.b16 %v384
          %v421 = vunpack.c.l.b16 %v385
          %v422 = vunpack.c.l.b16 %v386
          %v423 = vunpack.c.l.b16 %v387
          %v424 = vunpack.c.l.b16 %v388
          %v425 = vunpack.c.l.b16 %v389
          %v426 = vunpack.c.l.b16 %v390
          %v427 = vpack.c.b16 %v412, %v411
          %v428 = vpack.c.b16 %v414, %v413
          %v429 = vpack.c.b16 %v416, %v415
          %v430 = vpack.c.b16 %v418, %v417
          %v431 = vpack.c.b16 %v420, %v419
          %v432 = vpack.c.b16 %v422, %v421
          %v433 = vpack.c.b16 %v424, %v423
          %v434 = vpack.c.b16 %v426, %v425
          %443 = vmatpush.bf16.msra.mxu0 %v434
          %444 = vmatpush.bf16.msra.mxu0 %v433
          %445 = vmatpush.bf16.msra.mxu0 %v432
          %446 = vmatpush.bf16.msra.mxu0 %v431
          %447 = vmatpush.bf16.msra.mxu0 %v430
          %448 = vmatpush.bf16.msra.mxu0 %v429
          %449 = vmatpush.bf16.msra.mxu0 %v428
          %450 = vmatpush.bf16.msra.mxu0 %v427
          %451 = vmatmul.bf16.gmra.mxu0 %v374
          %v452 = vpop.f32.mrf.mxu0
          %v453 = vadd.f32 %v393, %v452
          %v454 = vpop.f32.mrf.mxu0
          %455 = vdwg.mxu0
          %v456 = vmax.f32 %v453, 0.0
          %v457 = vpack.c.bf16 %v456, %v456
          %458 = vst [vmem:[#allocation2] sm:$0xf] %v457
        $region68: #{tpu_custom_call.1} parent=47 // pred_fallthru
          _
        %v459 = vld [vmem:[#allocation2] sm:$0xf]
        %v460 = vld [vmem:[%s332] sm:$0xf]
        %v461 = vld [vmem:[%s332 + $0x4] sm:$0xf]
        %v462 = vld [vmem:[%s332 + $0x8] sm:$0xf]
        %v463 = vld [vmem:[%s332 + $0xc] sm:$0xf]
        %v464 = vld [vmem:[%s332 + $0x10] sm:$0xf]
        %v465 = vld [vmem:[%s332 + $0x14] sm:$0xf]
        %v466 = vld [vmem:[%s332 + $0x18] sm:$0xf]
        %v467 = vld [vmem:[%s332 + $0x1c] sm:$0xf]
        %v468 = vld [vmem:[%s332 + $0x20] sm:$0xf]
        %v469 = vld [vmem:[%s332 + $0x24] sm:$0xf]
        %v470 = vld [vmem:[%s332 + $0x28] sm:$0xf]
        %v471 = vld [vmem:[%s332 + $0x2c] sm:$0xf]
        %v472 = vld [vmem:[%s332 + $0x30] sm:$0xf]
        %v473 = vld [vmem:[%s332 + $0x34] sm:$0xf]
        %v474 = vld [vmem:[%s332 + $0x38] sm:$0xf]
        %v475 = vld [vmem:[%s332 + $0x3c] sm:$0xf]
        %v476 = vld [vmem:[%s369] sm:$0x1]
        %v478 = vperm.slane %v476, 0
        %v496 = vunpack.c.l.b16 %v460
        %v497 = vunpack.c.l.b16 %v461
        %v498 = vunpack.c.l.b16 %v462
        %v499 = vunpack.c.l.b16 %v463
        %v500 = vunpack.c.l.b16 %v464
        %v501 = vunpack.c.l.b16 %v465
        %v502 = vunpack.c.l.b16 %v466
        %v503 = vunpack.c.l.b16 %v467
        %v504 = vunpack.c.l.b16 %v468
        %v505 = vunpack.c.l.b16 %v469
        %v506 = vunpack.c.l.b16 %v470
        %v507 = vunpack.c.l.b16 %v471
        %v508 = vunpack.c.l.b16 %v472
        %v509 = vunpack.c.l.b16 %v473
        %v510 = vunpack.c.l.b16 %v474
        %v511 = vunpack.c.l.b16 %v475
        %v512 = vpack.c.b16 %v497, %v496
        %v513 = vpack.c.b16 %v499, %v498
        %v514 = vpack.c.b16 %v501, %v500
        %v515 = vpack.c.b16 %v503, %v502
        %v516 = vpack.c.b16 %v505, %v504
        %v517 = vpack.c.b16 %v507, %v506
        %v518 = vpack.c.b16 %v509, %v508
        %v519 = vpack.c.b16 %v511, %v510
        %528 = vmatpush.bf16.msra.mxu0 %v519
        %529 = vmatpush.bf16.msra.mxu0 %v518
        %530 = vmatpush.bf16.msra.mxu0 %v517
        %531 = vmatpush.bf16.msra.mxu0 %v516
        %532 = vmatpush.bf16.msra.mxu0 %v515
        %533 = vmatpush.bf16.msra.mxu0 %v514
        %534 = vmatpush.bf16.msra.mxu0 %v513
        %535 = vmatpush.bf16.msra.mxu0 %v512
        %536 = vmatmul.bf16.gmra.mxu0 %v459
        %v537 = vpop.f32.mrf.mxu0
        %v538 = vadd.f32 %v478, %v537
        %v539 = vpop.f32.mrf.mxu0
        %540 = vdwg.mxu0
        %v541 = vmax.f32 %v538, 0.0
        %v542 = vpack.c.bf16 %v541, %v541
        %543 = vst [vmem:[#allocation2] sm:$0xf] %v542
        %p544 = scmp.eq.s32.totalorder %s26, 1
        // Predicated region
        $region69: #{tpu_custom_call.1} parent=47 // pred_check
          %p545 = pneg %p544
        $region70: #{tpu_custom_call.1} parent=47 // pred_check_branch
          %547 = sbr.rel (%p545) target = $region72
        $region71: #{tpu_custom_call.1} parent=47 // pred_region
          %v548 = vld [vmem:[#allocation2] sm:$0xf]
          %v549 = vld [vmem:[#allocation9] sm:$0xf]
          %v550 = vld [vmem:[#allocation9 + $0x4] sm:$0xf]
          %v551 = vld [vmem:[#allocation9 + $0x8] sm:$0xf]
          %v552 = vld [vmem:[#allocation9 + $0xc] sm:$0xf]
          %v553 = vld [vmem:[#allocation9 + $0x10] sm:$0xf]
          %v554 = vld [vmem:[#allocation9 + $0x14] sm:$0xf]
          %v555 = vld [vmem:[#allocation9 + $0x18] sm:$0xf]
          %v556 = vld [vmem:[#allocation9 + $0x1c] sm:$0xf]
          %v557 = vld [vmem:[#allocation9 + $0x20] sm:$0xf]
          %v558 = vld [vmem:[#allocation9 + $0x24] sm:$0xf]
          %v559 = vld [vmem:[#allocation9 + $0x28] sm:$0xf]
          %v560 = vld [vmem:[#allocation9 + $0x2c] sm:$0xf]
          %v561 = vld [vmem:[#allocation9 + $0x30] sm:$0xf]
          %v562 = vld [vmem:[#allocation9 + $0x34] sm:$0xf]
          %v563 = vld [vmem:[#allocation9 + $0x38] sm:$0xf]
          %v564 = vld [vmem:[#allocation9 + $0x3c] sm:$0xf]
          %v565 = vld [vmem:[%s6] sm:$0x1]
          %v567 = vperm.slane %v565, 0
          %v585 = vunpack.c.l.b16 %v549
          %v586 = vunpack.c.l.b16 %v550
          %v587 = vunpack.c.l.b16 %v551
          %v588 = vunpack.c.l.b16 %v552
          %v589 = vunpack.c.l.b16 %v553
          %v590 = vunpack.c.l.b16 %v554
          %v591 = vunpack.c.l.b16 %v555
          %v592 = vunpack.c.l.b16 %v556
          %v593 = vunpack.c.l.b16 %v557
          %v594 = vunpack.c.l.b16 %v558
          %v595 = vunpack.c.l.b16 %v559
          %v596 = vunpack.c.l.b16 %v560
          %v597 = vunpack.c.l.b16 %v561
          %v598 = vunpack.c.l.b16 %v562
          %v599 = vunpack.c.l.b16 %v563
          %v600 = vunpack.c.l.b16 %v564
          %v601 = vpack.c.b16 %v586, %v585
          %v602 = vpack.c.b16 %v588, %v587
          %v603 = vpack.c.b16 %v590, %v589
          %v604 = vpack.c.b16 %v592, %v591
          %v605 = vpack.c.b16 %v594, %v593
          %v606 = vpack.c.b16 %v596, %v595
          %v607 = vpack.c.b16 %v598, %v597
          %v608 = vpack.c.b16 %v600, %v599
          %617 = vmatpush.bf16.msra.mxu0 %v608
          %618 = vmatpush.bf16.msra.mxu0 %v607
          %619 = vmatpush.bf16.msra.mxu0 %v606
          %620 = vmatpush.bf16.msra.mxu0 %v605
          %621 = vmatpush.bf16.msra.mxu0 %v604
          %622 = vmatpush.bf16.msra.mxu0 %v603
          %623 = vmatpush.bf16.msra.mxu0 %v602
          %624 = vmatpush.bf16.msra.mxu0 %v601
          %625 = vmatmul.bf16.gmra.mxu0 %v548
          %v626 = vpop.f32.mrf.mxu0
          %v627 = vadd.f32 %v567, %v626
          %v628 = vpop.f32.mrf.mxu0
          %629 = vdwg.mxu0
          %630 = vst [vmem:[#allocation10] sm:$0xff] %v627
        $region72: #{tpu_custom_call.1} parent=47 // pred_fallthru
          _
        // Predicated region
        $region73: #{tpu_custom_call.1} parent=47 // pred_check
          %p631 = pneg %p213
        $region74: #{tpu_custom_call.1} parent=47 // pred_check_branch
          %633 = sbr.rel (%p631) target = $region76
        $region75: #{tpu_custom_call.1} parent=47 // pred_region
          %635 = vsyncadd [#allocation5], 0
          %s636 = smul.addr %s25, 8
          %s637 = scalar_lea.hbm %s7, %s636
          %s639 = sshll.u32 [#allocation10], 4
          %s640 = int_to_ptr.vmem [resolvable:$true] %s639
          %s641 = sshll.u32 %s637, 4
          %s642 = int_to_ptr.hbm [resolvable:$true] %s641
          %644 = dma.vmem_to_hbm [thread:$0]  %s640, 128, %s642, [#allocation5]
        $region76: #{tpu_custom_call.1} parent=47 // pred_fallthru
          _
        // Predicated region
        $region77: #{tpu_custom_call.1} parent=47 // pred_check
          %p645 = pneg %p213
        $region78: #{tpu_custom_call.1} parent=47 // pred_check_branch
          %647 = sbr.rel (%p645) target = $region80
        $region79: #{tpu_custom_call.1} parent=47 // pred_region
          %649 = dma.done [#allocation5], 128
        $region80: #{tpu_custom_call.1} parent=47 // pred_fallthru
          _
      $region48: #{tpu_custom_call.1} parent=5 // pred_fallthru
        _
      %p650 = scmp.le.s32.totalorder 2, %s16
      // Predicated region
      $region81: #{tpu_custom_call.1} parent=5 // pred_check
        %p651 = pneg %p650
      $region82: #{tpu_custom_call.1} parent=5 // pred_check_branch
        %653 = sbr.rel (%p651) target = $region84
      $region83: #{tpu_custom_call.1} parent=5 // pred_region
        %s654 = ssub.s32 %s16, 2
      $region84: #{tpu_custom_call.1} parent=5 // pred_fallthru
        _
    $region6: #{tpu_custom_call.1} parent=1 // loop_footer
      %s20 = sadd.s32 1, %s16
    $region7: #{tpu_custom_call.1} parent=1 // loop_footer_branch
      %15 = sbr.rel target = $region3
    $region8: #{tpu_custom_call.1} parent=1 // loop_exit
      _
    %655 = vsyncpa [#allocation4], 1
    %s656 = scalar_lea.sflag [#allocation4], 1
    %657 = vsyncpa %s656, 1
    %658 = vsyncpa [#allocation7], 1
    %659 = vsyncpa [#allocation5], 1
    %s660 = scalar_lea.sflag [#allocation5], 1
    %661 = vsyncpa %s660, 1

</llo_original>
